<compile_context>
chip_gen: v6e
topology: v6e:2x2x1
jax: 0.10.0
libtpu: 0.0.40
codegen_flags: <defaults>
</compile_context>

<pallas_src>
import jax
import jax.numpy as jnp
from jax.experimental import pallas as pl
from jax.experimental.pallas import tpu as pltpu


HALF = 64           # lanes reserved per half (real / imag) in hidden activations
LANE = 2 * HALF     # 128: lane-dense hidden activation width


def complex_mlp_kernel(x_ref, w1_ref, b1_ref, w2_ref, b2_ref, w3_ref, b3_ref,
                       out_ref):
    """Fused forward over one batch tile: one MXU matmul per ComplexLinear.

    x_ref   : (TM, 16)   compact [re | im] input tile, f32
    w1_ref  : (16, 128)  block weight [[Wr|Wi],[-Wi|Wr]] for fc1
    w2/w3   : (128, 128) block weights for fc2 / fc3
    b*_ref  : (1, 128)   combined bias [br-bi | br+bi]
    out_ref : (TM, 2)    |fc3(x)|^2  (real-valued, lane-compact)
    """
    mm_dtype = w1_ref.dtype   # f32 by default; bf16 when enabled (v5e/v6e)

    def layer(h, w_ref, b_ref):
        # one (TM,K)x(K,128) MXU matmul (f32 accumulation) + one combined bias add
        return jnp.dot(h.astype(mm_dtype), w_ref[...],
                       preferred_element_type=jnp.float32) + b_ref[...]

    h = x_ref[...]                                    # (TM, 16), f32
    h = jnp.maximum(layer(h, w1_ref, b1_ref), 0.0)    # fc1 + complex_relu
    h = jnp.maximum(layer(h, w2_ref, b2_ref), 0.0)    # fc2 + complex_relu
    h = layer(h, w3_ref, b3_ref)                      # fc3: [re | im] in 128 lanes

    # |z|^2 = re^2 + im^2.  Real half lives in lanes [0,64), imag in [64,128);
    # add the two 64-lane halves, then keep only the out_f real output columns.
    sq = h * h                                        # (TM, 128)
    tot = sq[:, :HALF] + sq[:, HALF:]                 # (TM, 64)
    out_ref[...] = tot[:, :out_ref.shape[-1]]         # (TM, out_f) compact store


def init_complex_linear(key, in_features, out_features):
    """Deterministic init mimicking nn.Linear default (uniform +-1/sqrt(in)).
    Weights stored as (in, out) (transposed vs PyTorch), biases as (1, out)."""
    bound = 1.0 / jnp.sqrt(jnp.float32(in_features))
    k = jax.random.split(key, 4)
    wr = jax.random.uniform(k[0], (in_features, out_features), jnp.float32, -bound, bound)
    wi = jax.random.uniform(k[1], (in_features, out_features), jnp.float32, -bound, bound)
    br = jax.random.uniform(k[2], (1, out_features), jnp.float32, -bound, bound)
    bi = jax.random.uniform(k[3], (1, out_features), jnp.float32, -bound, bound)
    return wr, wi, br, bi


def _round_up(a, m):
    return -(-a // m) * m


def _pack_layer(wr, wi, br, bi, in_half, matmul_dtype):
    """Block weight [[Wr, Wi], [-Wi, Wr]] of shape (2*in_half, 128) and combined
    bias [br-bi | br+bi] of shape (1, 128); zero-filled outside the real extents.
    Padded hidden lanes stay exactly zero through bias + relu, so they never
    contaminate later layers."""
    in_f, out_f = wr.shape
    assert in_f <= in_half and out_f <= HALF
    wb = jnp.zeros((2 * in_half, LANE), jnp.float32)
    wb = wb.at[:in_f, :out_f].set(wr)
    wb = wb.at[:in_f, HALF:HALF + out_f].set(wi)
    wb = wb.at[in_half:in_half + in_f, :out_f].set(-wi)
    wb = wb.at[in_half:in_half + in_f, HALF:HALF + out_f].set(wr)
    bb = jnp.zeros((1, LANE), jnp.float32)
    bb = bb.at[:, :out_f].set(br - bi)
    bb = bb.at[:, HALF:HALF + out_f].set(br + bi)
    return wb.astype(matmul_dtype), bb


def mlp_forward(xr, xi, params, *, matmul_dtype=jnp.float32, tm=2048):
    """xr, xi: (B, 8) real/imag parts of the complex input. Returns (B, 2) f32.

    matmul_dtype=jnp.bfloat16 is recommended on v5e/v6e (full-rate MXU, half the
    weight bytes); accumulation and the elementwise epilogue stay f32.
    tm is the batch tile height (sweep 2048-4096 for large B)."""
    (w1r, w1i, b1r, b1i, w2r, w2i, b2r, b2i, w3r, w3i, b3r, b3i) = params
    B, in_f = xr.shape
    assert xi.shape == xr.shape
    out_f = w3r.shape[1]

    w1, b1 = _pack_layer(w1r, w1i, b1r, b1i, in_f, matmul_dtype)   # (2*in_f, 128)
    w2, b2 = _pack_layer(w2r, w2i, b2r, b2i, HALF, matmul_dtype)   # (128, 128)
    w3, b3 = _pack_layer(w3r, w3i, b3r, b3i, HALF, matmul_dtype)   # (128, 128)

    # --- batch tiling -------------------------------------------------------
    b8 = _round_up(max(B, 8), 8)
    tm_eff = min(tm, b8)
    if b8 >= 16:
        # Guarantee >= 2 grid steps whenever there is enough work so that
        # ("parallel",) can shard the batch axis across v7x's 2 TensorCores
        # (no-op for large B where the grid is already long).
        tm_eff = min(tm_eff, _round_up(-(-b8 // 2), 8))
    b_pad = _round_up(b8, tm_eff)

    # Compact host-side packing: (b_pad, 2*in_f) = [re | im]; padded rows are 0.
    x = jnp.zeros((b_pad, 2 * in_f), jnp.float32)
    x = x.at[:B, :in_f].set(xr)
    x = x.at[:B, in_f:].set(xi)

    x_spec = pl.BlockSpec((tm_eff, 2 * in_f), lambda i: (i, 0))     # batch-tiled
    w1_spec = pl.BlockSpec((2 * in_f, LANE), lambda i: (0, 0))      # VMEM-resident
    w_spec = pl.BlockSpec((LANE, LANE), lambda i: (0, 0))           # VMEM-resident
    b_spec = pl.BlockSpec((1, LANE), lambda i: (0, 0))              # VMEM-resident
    out_spec = pl.BlockSpec((tm_eff, out_f), lambda i: (i, 0))      # compact output

    out = pl.pallas_call(
        complex_mlp_kernel,
        out_shape=jax.ShapeDtypeStruct((b_pad, out_f), jnp.float32),
        grid_spec=pltpu.PrefetchScalarGridSpec(
            num_scalar_prefetch=0,
            grid=(b_pad // tm_eff,),
            in_specs=[x_spec, w1_spec, b_spec, w_spec, b_spec, w_spec, b_spec],
            out_specs=out_spec,
        ),
        compiler_params=pltpu.CompilerParams(
            dimension_semantics=("parallel",),   # shard batch tiles over TCs
        ),
    )(x, w1, b1, w2, b2, w3, b3)

    return out[:B]                               # drop padded batch rows only


def reference_forward(xr, xi, params):
    """Pure-JAX f32 reference for the same math (sanity check)."""
    (w1r, w1i, b1r, b1i, w2r, w2i, b2r, b2i, w3r, w3i, b3r, b3i) = params

    def clin(ar, ai, wr, wi, br, bi):
        fr = lambda z: z @ wr + br
        fi = lambda z: z @ wi + bi
        return fr(ar) - fi(ai), fr(ai) + fi(ar)

    hr, hi = clin(xr, xi, w1r, w1i, b1r, b1i)
    hr, hi = jnp.maximum(hr, 0.0), jnp.maximum(hi, 0.0)
    hr, hi = clin(hr, hi, w2r, w2i, b2r, b2i)
    hr, hi = jnp.maximum(hr, 0.0), jnp.maximum(hi, 0.0)
    hr, hi = clin(hr, hi, w3r, w3i, b3r, b3i)
    return hr * hr + hi * hi


if __name__ == "__main__":
    key = jax.random.PRNGKey(0)
    k_x, k_fc1, k_fc2, k_fc3 = jax.random.split(key, 4)

    B = 24  # small batch; still exercises the multi-step batch grid + padding
    kxr, kxi = jax.random.split(k_x)
    xr = jax.random.normal(kxr, (B, 8), jnp.float32)
    xi = jax.random.normal(kxi, (B, 8), jnp.float32)

    params = (
        *init_complex_linear(k_fc1, 8, 15),
        *init_complex_linear(k_fc2, 15, 16),
        *init_complex_linear(k_fc3, 16, 2),
    )

    ref = reference_forward(xr, xi, params)

    # f32 path: matches PyTorch complex64 math.
    out = jax.block_until_ready(mlp_forward(xr, xi, params))
    assert out.shape == (B, 2), out.shape
    assert jnp.allclose(out, ref, atol=1e-4, rtol=1e-4), "f32 mismatch vs reference"

    # bf16 matmul path (recommended on v5e/v6e): f32 accumulate, loose tolerance.
    out_bf16 = jax.block_until_ready(
        mlp_forward(xr, xi, params, matmul_dtype=jnp.bfloat16))
    assert out_bf16.shape == (B, 2), out_bf16.shape
    assert jnp.allclose(out_bf16, ref, atol=0.3, rtol=0.3), "bf16 smoke-check failed"

    print("KERNEL_OK")
</pallas_src>

<mosaic_0001>
module attributes {stable_mosaic.version = 11 : i64} {
  func.func @complex_mlp_kernel(%arg0: i32, %arg1: memref<16x16xf32, #tpu.memory_space<vmem>>, %arg2: memref<16x128xf32, #tpu.memory_space<vmem>>, %arg3: memref<1x128xf32, #tpu.memory_space<vmem>>, %arg4: memref<128x128xf32, #tpu.memory_space<vmem>>, %arg5: memref<1x128xf32, #tpu.memory_space<vmem>>, %arg6: memref<128x128xf32, #tpu.memory_space<vmem>>, %arg7: memref<1x128xf32, #tpu.memory_space<vmem>>, %arg8: memref<16x2xf32, #tpu.memory_space<vmem>>) attributes {dimension_semantics = [#tpu.dimension_semantics<parallel>], iteration_bounds = array<i64: 2>, scalar_prefetch = 0 : i64, scratch_operands = 0 : i64, tpu.core_type = #tpu.core_type<tc>, window_params = [{transform_indices = @transform_0, window_bounds = array<i64: 16, 16>}, {pipeline_mode = #tpu.pipeline_mode<synchronous>, transform_indices = @transform_1, window_bounds = array<i64: 16, 128>}, {pipeline_mode = #tpu.pipeline_mode<synchronous>, transform_indices = @transform_2, window_bounds = array<i64: 1, 128>}, {pipeline_mode = #tpu.pipeline_mode<synchronous>, transform_indices = @transform_3, window_bounds = array<i64: 128, 128>}, {pipeline_mode = #tpu.pipeline_mode<synchronous>, transform_indices = @transform_4, window_bounds = array<i64: 1, 128>}, {pipeline_mode = #tpu.pipeline_mode<synchronous>, transform_indices = @transform_5, window_bounds = array<i64: 128, 128>}, {pipeline_mode = #tpu.pipeline_mode<synchronous>, transform_indices = @transform_6, window_bounds = array<i64: 1, 128>}, {transform_indices = @transform_7, window_bounds = array<i64: 16, 2>}]} {
    %c0 = arith.constant 0 : index
    %c0_0 = arith.constant 0 : index
    %0 = vector.load %arg1[%c0, %c0_0] : memref<16x16xf32, #tpu.memory_space<vmem>>, vector<16x16xf32>
    %c0_1 = arith.constant 0 : index
    %c0_2 = arith.constant 0 : index
    %1 = vector.load %arg2[%c0_1, %c0_2] : memref<16x128xf32, #tpu.memory_space<vmem>>, vector<16x128xf32>
    %cst = arith.constant dense<0.000000e+00> : vector<16x128xf32>
    %2 = tpu.matmul %0, %1, %cst {dimension_numbers = #tpu.dot_dimension_numbers<[1], [0], [0], [1], [0, 0, 1, 1], [], []>} : vector<16x16xf32>, vector<16x128xf32>, vector<16x128xf32> -> vector<16x128xf32>
    %c0_3 = arith.constant 0 : index
    %c0_4 = arith.constant 0 : index
    %3 = vector.load %arg3[%c0_3, %c0_4] : memref<1x128xf32, #tpu.memory_space<vmem>>, vector<1x128xf32>
    %4 = vector.broadcast %3 : vector<1x128xf32> to vector<16x128xf32>
    %5 = arith.addf %2, %4 : vector<16x128xf32>
    %cst_5 = arith.constant 0.000000e+00 : f32
    %6 = vector.broadcast %cst_5 : f32 to vector<16x128xf32>
    %7 = arith.maximumf %5, %6 : vector<16x128xf32>
    %c0_6 = arith.constant 0 : index
    %c0_7 = arith.constant 0 : index
    %8 = vector.load %arg4[%c0_6, %c0_7] : memref<128x128xf32, #tpu.memory_space<vmem>>, vector<128x128xf32>
    %cst_8 = arith.constant dense<0.000000e+00> : vector<16x128xf32>
    %9 = tpu.matmul %7, %8, %cst_8 {dimension_numbers = #tpu.dot_dimension_numbers<[1], [0], [0], [1], [0, 0, 1, 1], [], []>} : vector<16x128xf32>, vector<128x128xf32>, vector<16x128xf32> -> vector<16x128xf32>
    %c0_9 = arith.constant 0 : index
    %c0_10 = arith.constant 0 : index
    %10 = vector.load %arg5[%c0_9, %c0_10] : memref<1x128xf32, #tpu.memory_space<vmem>>, vector<1x128xf32>
    %11 = vector.broadcast %10 : vector<1x128xf32> to vector<16x128xf32>
    %12 = arith.addf %9, %11 : vector<16x128xf32>
    %cst_11 = arith.constant 0.000000e+00 : f32
    %13 = vector.broadcast %cst_11 : f32 to vector<16x128xf32>
    %14 = arith.maximumf %12, %13 : vector<16x128xf32>
    %c0_12 = arith.constant 0 : index
    %c0_13 = arith.constant 0 : index
    %15 = vector.load %arg6[%c0_12, %c0_13] : memref<128x128xf32, #tpu.memory_space<vmem>>, vector<128x128xf32>
    %cst_14 = arith.constant dense<0.000000e+00> : vector<16x128xf32>
    %16 = tpu.matmul %14, %15, %cst_14 {dimension_numbers = #tpu.dot_dimension_numbers<[1], [0], [0], [1], [0, 0, 1, 1], [], []>} : vector<16x128xf32>, vector<128x128xf32>, vector<16x128xf32> -> vector<16x128xf32>
    %c0_15 = arith.constant 0 : index
    %c0_16 = arith.constant 0 : index
    %17 = vector.load %arg7[%c0_15, %c0_16] : memref<1x128xf32, #tpu.memory_space<vmem>>, vector<1x128xf32>
    %18 = vector.broadcast %17 : vector<1x128xf32> to vector<16x128xf32>
    %19 = arith.addf %16, %18 : vector<16x128xf32>
    %20 = arith.mulf %19, %19 : vector<16x128xf32>
    %21 = vector.extract_strided_slice %20 {offsets = [0, 0], sizes = [16, 64], strides = [1, 1]} : vector<16x128xf32> to vector<16x64xf32>
    %22 = vector.extract_strided_slice %20 {offsets = [0, 64], sizes = [16, 64], strides = [1, 1]} : vector<16x128xf32> to vector<16x64xf32>
    %23 = arith.addf %21, %22 : vector<16x64xf32>
    %24 = vector.extract_strided_slice %23 {offsets = [0, 0], sizes = [16, 2], strides = [1, 1]} : vector<16x64xf32> to vector<16x2xf32>
    %c0_17 = arith.constant 0 : index
    %c0_18 = arith.constant 0 : index
    %25 = vector.load %arg8[%c0_17, %c0_18] : memref<16x2xf32, #tpu.memory_space<vmem>>, vector<16x2xf32>
    tpu.vector_store %arg8[%c0_17, %c0_18], %24 {strides = array<i32>} : memref<16x2xf32, #tpu.memory_space<vmem>>, vector<16x2xf32>,
    return
  }
  func.func @transform_0(%arg0: i32) -> (i32, i32) {
    %c0_i32 = arith.constant 0 : i32
    %c0_i32_0 = arith.constant 0 : i32
    return %arg0, %c0_i32 : i32, i32
  }
  func.func @transform_1(%arg0: i32) -> (i32, i32) {
    %c0_i32 = arith.constant 0 : i32
    %c0_i32_0 = arith.constant 0 : i32
    %c0_i32_1 = arith.constant 0 : i32
    return %c0_i32, %c0_i32_0 : i32, i32
  }
  func.func @transform_2(%arg0: i32) -> (i32, i32) {
    %c0_i32 = arith.constant 0 : i32
    %c0_i32_0 = arith.constant 0 : i32
    %c0_i32_1 = arith.constant 0 : i32
    return %c0_i32, %c0_i32_0 : i32, i32
  }
  func.func @transform_3(%arg0: i32) -> (i32, i32) {
    %c0_i32 = arith.constant 0 : i32
    %c0_i32_0 = arith.constant 0 : i32
    %c0_i32_1 = arith.constant 0 : i32
    return %c0_i32, %c0_i32_0 : i32, i32
  }
  func.func @transform_4(%arg0: i32) -> (i32, i32) {
    %c0_i32 = arith.constant 0 : i32
    %c0_i32_0 = arith.constant 0 : i32
    %c0_i32_1 = arith.constant 0 : i32
    return %c0_i32, %c0_i32_0 : i32, i32
  }
  func.func @transform_5(%arg0: i32) -> (i32, i32) {
    %c0_i32 = arith.constant 0 : i32
    %c0_i32_0 = arith.constant 0 : i32
    %c0_i32_1 = arith.constant 0 : i32
    return %c0_i32, %c0_i32_0 : i32, i32
  }
  func.func @transform_6(%arg0: i32) -> (i32, i32) {
    %c0_i32 = arith.constant 0 : i32
    %c0_i32_0 = arith.constant 0 : i32
    %c0_i32_1 = arith.constant 0 : i32
    return %c0_i32, %c0_i32_0 : i32, i32
  }
  func.func @transform_7(%arg0: i32) -> (i32, i32) {
    %c0_i32 = arith.constant 0 : i32
    %c0_i32_0 = arith.constant 0 : i32
    return %arg0, %c0_i32 : i32, i32
  }
}

</mosaic_0001>

<llo_original>
// kernel: tpu_custom_call.1
$region0: #{tpu_custom_call.1}
  #allocation0 [shape = 'u32[]', space=smem, size = 0x4, offset = 0x4, fixed_abs, tag = 'smem constant byte address 0x4 - core index']
  #allocation1 [shape = 'u32[144,128]{1,0:T(1,128)}', space=vmem, size = 0x12000, scoped, tag = 'internal scratch']
  %s0 = inlined_call_operand.vmem [shape: f32[32,16], index: 0, kind: input, shape index: {}]
  %s1 = inlined_call_operand.vmem [shape: f32[16,128], index: 1, kind: input, shape index: {}]
  %s2 = inlined_call_operand.vmem [shape: f32[1,128], index: 2, kind: input, shape index: {}]
  %s3 = inlined_call_operand.hbm [shape: f32[128,128], index: 3, kind: input, shape index: {}]
  %s4 = inlined_call_operand.vmem [shape: f32[1,128], index: 4, kind: input, shape index: {}]
  %s5 = inlined_call_operand.hbm [shape: f32[128,128], index: 5, kind: input, shape index: {}]
  %s6 = inlined_call_operand.vmem [shape: f32[1,128], index: 6, kind: input, shape index: {}]
  %s7 = inlined_call_operand.vmem [shape: f32[32,2], index: 7, kind: output, shape index: {}]
  %s8 = sld [smem:[#allocation0]]
  $region69: #{tpu_custom_call.1} parent=0
    _
  %s10 = ssub.s32 1, %s8
  %s11 = scalar_select 0, %s10, %s8
  $region1: #{tpu_custom_call.1} parent=0
    #allocation2 [shape = 'u8[65536]{0}', space=vmem, size = 0x10000, scoped, tag = 'input window, operand 3, single buffered']
    #allocation3 [shape = 's32[2]{0}', space=sflag, size = 0x8, scoped, tag = 'scoped memory for tpu_custom_call.1']
    #allocation4 [shape = 'u8[65536]{0}', space=vmem, size = 0x10000, scoped, tag = 'input window, operand 5, single buffered']
    #allocation5 [shape = 's32[1]{0}', space=sflag, size = 0x4, scoped, tag = 'scoped memory for tpu_custom_call.1']
    %12 = vsyncpa [#allocation3], 0
    %13 = vsyncpa [#allocation5], 0
    loop: start=0, step=1, limit=4
    $region2: #{tpu_custom_call.1} parent=1 // loop_pre_header
      _
    $region3: #{tpu_custom_call.1} parent=1 // loop_header
      %s15 = sphi 0, %s19
      %p16 = scmp.ge.s32.totalorder %s15, 4
      %s25 = sphi 0, %s27
      %s28 = sphi 0, %s25
      %s29 = sphi 0, %s28
      %s45 = sphi 0, %s29
      %s49 = sphi 0, %s49
      %s51 = sphi 0, %s49
      %s52 = sphi 0, %s51
      %s66 = sphi 0, %s52
      %s70 = sphi 0, %s70
      %s72 = sphi 0, %s70
      %s73 = sphi 0, %s72
      %s87 = sphi 0, %s73
      %s91 = sphi 0, %s91
      %s93 = sphi 0, %s91
      %s94 = sphi 0, %s93
      %s108 = sphi 0, %s94
      %s112 = sphi 0, %s112
      %s114 = sphi 0, %s112
      %s115 = sphi 0, %s114
      %s129 = sphi 0, %s115
      %s133 = sphi 0, %s133
      %s135 = sphi 0, %s133
      %s136 = sphi 0, %s135
      %s150 = sphi 0, %s136
      %s154 = sphi 0, %s154
      %s156 = sphi 0, %s154
      %s157 = sphi 0, %s156
      %s171 = sphi 0, %s157
      %s177 = sphi 0, %s179
      %s180 = sphi 0, %s177
      %s181 = sphi 0, %s180
      %s197 = sphi 0, %s181
    $region4: #{tpu_custom_call.1} parent=1 // loop_header_branch
      %18 = sbr.rel (%p16) target = $region8
    $region5: #{tpu_custom_call.1} parent=1 // loop_body
      %s20 = ssub.s32 %s15, 1
      %s21 = ssub.s32 %s15, 2
      %s22 = sadd.s32 %s15, 1
      %s23 = ssub.s32 %s15, %s22
      %p24 = scmp.eq.s32.totalorder %s23, 0
      %s26 = sadd.s32 %s25, 1
      %s27 = scalar_select %p24, %s25, %s26
      %p30 = pneg %p24
      %p31 = scmp.eq.s32.totalorder %s15, 1
      %p32 = por %p30, %p31
      %p33 = scmp.ne.s32.totalorder %s25, %s28
      %p34 = scmp.eq.s32.totalorder %s15, 0
      %p35 = por %p33, %p34
      %p36 = scmp.ne.s32.totalorder %s25, %s28
      %p37 = scmp.eq.s32.totalorder %s20, 1
      %p38 = por %p36, %p37
      %p39 = scmp.ne.s32.totalorder %s28, %s29
      %p40 = scmp.eq.s32.totalorder %s20, 0
      %p41 = por %p39, %p40
      %p42 = scmp.ne.s32.totalorder %s28, %s29
      %p43 = scmp.eq.s32.totalorder %s21, 1
      %p44 = por %p42, %p43
      %p46 = scmp.ne.s32.totalorder %s29, %s45
      %p47 = scmp.eq.s32.totalorder %s21, 0
      %p48 = por %p46, %p47
      %s50 = sadd.s32 %s49, 1
      %p53 = scmp.eq.s32.totalorder %s15, 1
      %p54 = scmp.ne.s32.totalorder %s49, %s51
      %p55 = scmp.eq.s32.totalorder %s15, 0
      %p56 = por %p54, %p55
      %p57 = scmp.ne.s32.totalorder %s49, %s51
      %p58 = scmp.eq.s32.totalorder %s20, 1
      %p59 = por %p57, %p58
      %p60 = scmp.ne.s32.totalorder %s51, %s52
      %p61 = scmp.eq.s32.totalorder %s20, 0
      %p62 = por %p60, %p61
      %p63 = scmp.ne.s32.totalorder %s51, %s52
      %p64 = scmp.eq.s32.totalorder %s21, 1
      %p65 = por %p63, %p64
      %p67 = scmp.ne.s32.totalorder %s52, %s66
      %p68 = scmp.eq.s32.totalorder %s21, 0
      %p69 = por %p67, %p68
      %s71 = sadd.s32 %s70, 1
      %p74 = scmp.eq.s32.totalorder %s15, 1
      %p75 = scmp.ne.s32.totalorder %s70, %s72
      %p76 = scmp.eq.s32.totalorder %s15, 0
      %p77 = por %p75, %p76
      %p78 = scmp.ne.s32.totalorder %s70, %s72
      %p79 = scmp.eq.s32.totalorder %s20, 1
      %p80 = por %p78, %p79
      %p81 = scmp.ne.s32.totalorder %s72, %s73
      %p82 = scmp.eq.s32.totalorder %s20, 0
      %p83 = por %p81, %p82
      %p84 = scmp.ne.s32.totalorder %s72, %s73
      %p85 = scmp.eq.s32.totalorder %s21, 1
      %p86 = por %p84, %p85
      %p88 = scmp.ne.s32.totalorder %s73, %s87
      %p89 = scmp.eq.s32.totalorder %s21, 0
      %p90 = por %p88, %p89
      %s92 = sadd.s32 %s91, 1
      %p95 = scmp.eq.s32.totalorder %s15, 1
      %p96 = scmp.ne.s32.totalorder %s91, %s93
      %p97 = scmp.eq.s32.totalorder %s15, 0
      %p98 = por %p96, %p97
      %p99 = scmp.ne.s32.totalorder %s91, %s93
      %p100 = scmp.eq.s32.totalorder %s20, 1
      %p101 = por %p99, %p100
      %p102 = scmp.ne.s32.totalorder %s93, %s94
      %p103 = scmp.eq.s32.totalorder %s20, 0
      %p104 = por %p102, %p103
      %p105 = scmp.ne.s32.totalorder %s93, %s94
      %p106 = scmp.eq.s32.totalorder %s21, 1
      %p107 = por %p105, %p106
      %p109 = scmp.ne.s32.totalorder %s94, %s108
      %p110 = scmp.eq.s32.totalorder %s21, 0
      %p111 = por %p109, %p110
      %s113 = sadd.s32 %s112, 1
      %p116 = scmp.eq.s32.totalorder %s15, 1
      %p117 = scmp.ne.s32.totalorder %s112, %s114
      %p118 = scmp.eq.s32.totalorder %s15, 0
      %p119 = por %p117, %p118
      %p120 = scmp.ne.s32.totalorder %s112, %s114
      %p121 = scmp.eq.s32.totalorder %s20, 1
      %p122 = por %p120, %p121
      %p123 = scmp.ne.s32.totalorder %s114, %s115
      %p124 = scmp.eq.s32.totalorder %s20, 0
      %p125 = por %p123, %p124
      %p126 = scmp.ne.s32.totalorder %s114, %s115
      %p127 = scmp.eq.s32.totalorder %s21, 1
      %p128 = por %p126, %p127
      %p130 = scmp.ne.s32.totalorder %s115, %s129
      %p131 = scmp.eq.s32.totalorder %s21, 0
      %p132 = por %p130, %p131
      %s134 = sadd.s32 %s133, 1
      %p137 = scmp.eq.s32.totalorder %s15, 1
      %p138 = scmp.ne.s32.totalorder %s133, %s135
      %p139 = scmp.eq.s32.totalorder %s15, 0
      %p140 = por %p138, %p139
      %p141 = scmp.ne.s32.totalorder %s133, %s135
      %p142 = scmp.eq.s32.totalorder %s20, 1
      %p143 = por %p141, %p142
      %p144 = scmp.ne.s32.totalorder %s135, %s136
      %p145 = scmp.eq.s32.totalorder %s20, 0
      %p146 = por %p144, %p145
      %p147 = scmp.ne.s32.totalorder %s135, %s136
      %p148 = scmp.eq.s32.totalorder %s21, 1
      %p149 = por %p147, %p148
      %p151 = scmp.ne.s32.totalorder %s136, %s150
      %p152 = scmp.eq.s32.totalorder %s21, 0
      %p153 = por %p151, %p152
      %s155 = sadd.s32 %s154, 1
      %p158 = scmp.eq.s32.totalorder %s15, 1
      %p159 = scmp.ne.s32.totalorder %s154, %s156
      %p160 = scmp.eq.s32.totalorder %s15, 0
      %p161 = por %p159, %p160
      %p162 = scmp.ne.s32.totalorder %s154, %s156
      %p163 = scmp.eq.s32.totalorder %s20, 1
      %p164 = por %p162, %p163
      %p165 = scmp.ne.s32.totalorder %s156, %s157
      %p166 = scmp.eq.s32.totalorder %s20, 0
      %p167 = por %p165, %p166
      %p168 = scmp.ne.s32.totalorder %s156, %s157
      %p169 = scmp.eq.s32.totalorder %s21, 1
      %p170 = por %p168, %p169
      %p172 = scmp.ne.s32.totalorder %s157, %s171
      %p173 = scmp.eq.s32.totalorder %s21, 0
      %p174 = por %p172, %p173
      %s175 = ssub.s32 %s15, %s22
      %p176 = scmp.eq.s32.totalorder %s175, 0
      %s178 = sadd.s32 %s177, 1
      %s179 = scalar_select %p176, %s177, %s178
      %p182 = pneg %p176
      %p183 = scmp.eq.s32.totalorder %s15, 1
      %p184 = por %p182, %p183
      %p185 = scmp.ne.s32.totalorder %s177, %s180
      %p186 = scmp.eq.s32.totalorder %s15, 0
      %p187 = por %p185, %p186
      %p188 = scmp.ne.s32.totalorder %s177, %s180
      %p189 = scmp.eq.s32.totalorder %s20, 1
      %p190 = por %p188, %p189
      %p191 = scmp.ne.s32.totalorder %s180, %s181
      %p192 = scmp.eq.s32.totalorder %s20, 0
      %p193 = por %p191, %p192
      %p194 = scmp.ne.s32.totalorder %s180, %s181
      %p195 = scmp.eq.s32.totalorder %s21, 1
      %p196 = por %p194, %p195
      %p198 = scmp.ne.s32.totalorder %s181, %s197
      %p199 = scmp.eq.s32.totalorder %s21, 0
      %p200 = por %p198, %p199
      %p201 = scmp.le.s32.totalorder 1, %s15
      %p202 = scmp.lt.s32.totalorder %s15, 3
      %p203 = pnand %p201, %p202
      %p204 = pneg %p203
      // Predicated region
      $region9: #{tpu_custom_call.1} parent=5 // pred_check
        _
      $region10: #{tpu_custom_call.1} parent=5 // pred_check_branch
        %206 = sbr.rel (%p203) target = $region12
      $region11: #{tpu_custom_call.1} parent=5 // pred_region
        %s207 = ssub.s32 %s15, 1
        // Predicated region
        $region13: #{tpu_custom_call.1} parent=11 // pred_check
          %p208 = pneg %p62
        $region14: #{tpu_custom_call.1} parent=11 // pred_check_branch
          %210 = sbr.rel (%p208) target = $region16
        $region15: #{tpu_custom_call.1} parent=11 // pred_region
          _
        $region16: #{tpu_custom_call.1} parent=11 // pred_fallthru
          _
        // Predicated region
        $region17: #{tpu_custom_call.1} parent=11 // pred_check
          %p211 = pneg %p83
        $region18: #{tpu_custom_call.1} parent=11 // pred_check_branch
          %213 = sbr.rel (%p211) target = $region20
        $region19: #{tpu_custom_call.1} parent=11 // pred_region
          _
        $region20: #{tpu_custom_call.1} parent=11 // pred_fallthru
          _
        // Predicated region
        $region21: #{tpu_custom_call.1} parent=11 // pred_check
          %p214 = pneg %p104
        $region22: #{tpu_custom_call.1} parent=11 // pred_check_branch
          %216 = sbr.rel (%p214) target = $region24
        $region23: #{tpu_custom_call.1} parent=11 // pred_region
          %s218 = ssub.s32 2048, 2048
          %219 = vsyncadd [#allocation3], %s218
          %s220 = sshll.u32 [#allocation2], 4
          %s221 = int_to_ptr.vmem [resolvable:$true] %s220
          %226 = dma.hbm_to_vmem [thread:$0]  %s3, 2048, %s221, [#allocation3], 128, 128, 8
        $region24: #{tpu_custom_call.1} parent=11 // pred_fallthru
          _
        // Predicated region
        $region25: #{tpu_custom_call.1} parent=11 // pred_check
          %p227 = pneg %p125
        $region26: #{tpu_custom_call.1} parent=11 // pred_check_branch
          %229 = sbr.rel (%p227) target = $region28
        $region27: #{tpu_custom_call.1} parent=11 // pred_region
          _
        $region28: #{tpu_custom_call.1} parent=11 // pred_fallthru
          _
        // Predicated region
        $region29: #{tpu_custom_call.1} parent=11 // pred_check
          %p230 = pneg %p146
        $region30: #{tpu_custom_call.1} parent=11 // pred_check_branch
          %232 = sbr.rel (%p230) target = $region32
        $region31: #{tpu_custom_call.1} parent=11 // pred_region
          %s234 = ssub.s32 2048, 2048
          %235 = vsyncadd [#allocation5], %s234
          %s236 = sshll.u32 [#allocation4], 4
          %s237 = int_to_ptr.vmem [resolvable:$true] %s236
          %242 = dma.hbm_to_vmem [thread:$0]  %s5, 2048, %s237, [#allocation5], 128, 128, 8
        $region32: #{tpu_custom_call.1} parent=11 // pred_fallthru
          _
        // Predicated region
        $region33: #{tpu_custom_call.1} parent=11 // pred_check
          %p243 = pneg %p167
        $region34: #{tpu_custom_call.1} parent=11 // pred_check_branch
          %245 = sbr.rel (%p243) target = $region36
        $region35: #{tpu_custom_call.1} parent=11 // pred_region
          _
        $region36: #{tpu_custom_call.1} parent=11 // pred_fallthru
          _
      $region12: #{tpu_custom_call.1} parent=5 // pred_fallthru
        _
      %p246 = scmp.lt.s32.totalorder %s15, 2
      // Predicated region
      $region37: #{tpu_custom_call.1} parent=5 // pred_check
        %p247 = pneg %p246
      $region38: #{tpu_custom_call.1} parent=5 // pred_check_branch
        %249 = sbr.rel (%p247) target = $region40
      $region39: #{tpu_custom_call.1} parent=5 // pred_region
        // Predicated region
        $region41: #{tpu_custom_call.1} parent=39 // pred_check
          %p250 = pneg %p35
        $region42: #{tpu_custom_call.1} parent=39 // pred_check_branch
          %252 = sbr.rel (%p250) target = $region44
        $region43: #{tpu_custom_call.1} parent=39 // pred_region
          %s253 = smul.u32 2, %s15
          %p254 = scmp.lt.s32.totalorder %s253, 3
          %s255 = scalar_select %p254, %s253, 3
          %s256 = smul.addr %s255, 8
          %s257 = scalar_lea.vmem %s0, %s256
          %s258 = smul.u32 2, %s15
        $region44: #{tpu_custom_call.1} parent=39 // pred_fallthru
          _
      $region40: #{tpu_custom_call.1} parent=5 // pred_fallthru
        _
      %p259 = scmp.le.s32.totalorder 1, %s15
      %p260 = scmp.lt.s32.totalorder %s15, 3
      %p261 = pnand %p259, %p260
      %p262 = pneg %p261
      // Predicated region
      $region45: #{tpu_custom_call.1} parent=5 // pred_check
        _
      $region46: #{tpu_custom_call.1} parent=5 // pred_check_branch
        %264 = sbr.rel (%p261) target = $region48
      $region47: #{tpu_custom_call.1} parent=5 // pred_region
        %s265 = ssub.s32 %s15, 1
        // Predicated region
        $region49: #{tpu_custom_call.1} parent=47 // pred_check
          %p266 = pneg %p104
        $region50: #{tpu_custom_call.1} parent=47 // pred_check_branch
          %268 = sbr.rel (%p266) target = $region52
        $region51: #{tpu_custom_call.1} parent=47 // pred_region
          %269 = dma.done [#allocation3], 2048
        $region52: #{tpu_custom_call.1} parent=47 // pred_fallthru
          _
        // Predicated region
        $region53: #{tpu_custom_call.1} parent=47 // pred_check
          %p270 = pneg %p146
        $region54: #{tpu_custom_call.1} parent=47 // pred_check_branch
          %272 = sbr.rel (%p270) target = $region56
        $region55: #{tpu_custom_call.1} parent=47 // pred_region
          %273 = dma.done [#allocation5], 2048
        $region56: #{tpu_custom_call.1} parent=47 // pred_fallthru
          _
        %s274 = smul.u32 2, %s20
        %p275 = scmp.lt.s32.totalorder %s274, 3
        %s276 = scalar_select %p275, %s274, 3
        %s277 = smul.addr %s276, 8
        %s278 = scalar_lea.vmem %s0, %s277
        %p279 = pneg %p41
        %p280 = pneg %p38
        %p281 = pneg %p62
        %p282 = pneg %p59
        %p283 = pneg %p83
        %p284 = pneg %p80
        %p285 = pneg %p104
        %p286 = pneg %p101
        %p287 = pneg %p125
        %p288 = pneg %p122
        %p289 = pneg %p146
        %p290 = pneg %p143
        %p291 = pneg %p167
        %p292 = pneg %p164
        %p293 = pneg %p193
        %p294 = pneg %p190
        %s295 = smul.u32 2, %s20
        %p296 = scmp.lt.s32.totalorder %s295, 3
        %s297 = scalar_select %p296, %s295, 3
        %s298 = smul.addr %s297, 8
        %s299 = scalar_lea.vmem %s7, %s298
        %s300 = smul.u32 2, %s20
        %p301 = scmp.lt.s32.totalorder %s300, 3
        %s302 = scalar_select %p301, %s300, 3
        %s303 = smul.addr %s302, 8
        %s304 = scalar_lea.vmem %s0, %s303
        %s305 = smul.u32 2, %s20
        %s306 = smul.u32 2, %s20
        %p307 = scmp.lt.s32.totalorder %s306, 3
        %s308 = scalar_select %p307, %s306, 3
        %s309 = smul.addr %s308, 8
        %s310 = scalar_lea.vmem %s7, %s309
        %s311 = smul.u32 2, %s20
        %v312 = vld [vmem:[%s304] sm:$0xff]
        %v313 = vld [vmem:[%s304 + $0x8] sm:$0xff]
        %v314 = vld [vmem:[%s1] sm:$0xff]
        %v315 = vld [vmem:[%s1 + $0x8] sm:$0xff]
        %v316 = vld [vmem:[%s2] sm:$0x1]
        %v318 = vlaneseq
        %v319 = vshrl.u32 %v318, 7
        %v320 = vsub.s32 0, %v319
        %v321 = vrot.slane %v316, %v320
        %vm323 = vcmask 130048
        %v325 = vsel %vm323, %v312, 0
        %v328 = vsel %vm323, %v313, 0
        %330 = vmatprep.subr.mxu0 0.0
        %331 = vmatpush1.msra.mxu0 0.0
        %332 = vmatprep.subr.mxu0 0.0
        %333 = vmatpush1.msra.mxu0 0.0
        %334 = vmatprep.subr.mxu0 0.0
        %335 = vmatpush1.msra.mxu0 0.0
        %336 = vmatprep.subr.mxu0 0.0
        %337 = vmatpush1.msra.mxu0 0.0
        %338 = vmatprep.subr.mxu0 0.0
        %339 = vmatpush1.msra.mxu0 0.0
        %340 = vmatprep.subr.mxu0 0.0
        %341 = vmatpush1.msra.mxu0 0.0
        %342 = vmatprep.subr.mxu0 0.0
        %343 = vmatpush1.msra.mxu0 0.0
        %344 = vmatprep.subr.mxu0 0.0
        %345 = vmatpush1.msra.mxu0 0.0
        %346 = vmatprep.subr.mxu0 0.0
        %347 = vmatpush1.msra.mxu0 0.0
        %348 = vmatprep.subr.mxu0 0.0
        %349 = vmatpush1.msra.mxu0 0.0
        %350 = vmatprep.subr.mxu0 0.0
        %351 = vmatpush1.msra.mxu0 0.0
        %352 = vmatprep.subr.mxu0 0.0
        %353 = vmatpush1.msra.mxu0 0.0
        %354 = vmatprep.subr.mxu0 0.0
        %355 = vmatpush1.msra.mxu0 0.0
        %356 = vmatprep.subr.mxu0 0.0
        %357 = vmatpush1.msra.mxu0 0.0
        %358 = vmatprep.subr.mxu0 0.0
        %359 = vmatpush1.msra.mxu0 %v315
        %360 = vmatprep.subr.mxu0 0.0
        %361 = vmatpush1.msra.mxu0 %v314
        %362 = vmatprep.subr.mxu0 0.0
        %363 = vmatpush2.msra.mxu0 0.0
        %364 = vmatprep.subr.mxu0 0.0
        %365 = vmatpush2.msra.mxu0 0.0
        %366 = vmatprep.subr.mxu0 0.0
        %367 = vmatpush2.msra.mxu0 0.0
        %368 = vmatprep.subr.mxu0 0.0
        %369 = vmatpush2.msra.mxu0 0.0
        %370 = vmatprep.subr.mxu0 0.0
        %371 = vmatpush2.msra.mxu0 0.0
        %372 = vmatprep.subr.mxu0 0.0
        %373 = vmatpush2.msra.mxu0 0.0
        %374 = vmatprep.subr.mxu0 0.0
        %375 = vmatpush2.msra.mxu0 0.0
        %376 = vmatprep.subr.mxu0 0.0
        %377 = vmatpush2.msra.mxu0 0.0
        %378 = vmatprep.subr.mxu0 0.0
        %379 = vmatpush2.msra.mxu0 0.0
        %380 = vmatprep.subr.mxu0 0.0
        %381 = vmatpush2.msra.mxu0 0.0
        %382 = vmatprep.subr.mxu0 0.0
        %383 = vmatpush2.msra.mxu0 0.0
        %384 = vmatprep.subr.mxu0 0.0
        %385 = vmatpush2.msra.mxu0 0.0
        %386 = vmatprep.subr.mxu0 0.0
        %387 = vmatpush2.msra.mxu0 0.0
        %388 = vmatprep.subr.mxu0 0.0
        %389 = vmatpush2.msra.mxu0 0.0
        %390 = vmatprep.subr.mxu0 0.0
        %391 = vmatpush2.msra.mxu0 0.0
        %392 = vmatprep.subr.mxu0 0.0
        %393 = vmatpush2.msra.mxu0 0.0
        %394 = vmatprep.mubr.f32.mxu0 0.0
        %395 = vmatmul.mubr.f32.gmra.mxu0 %v325
        %v396 = vpop.f32.mrf.mxu0
        %v397 = vadd.f32 %v321, %v396
        %v398 = vpop.f32.mrf.mxu0
        %399 = vmatprep.mubr.f32.mxu0 0.0
        %400 = vmatmul.mubr.f32.gmra.mxu0 %v328
        %v401 = vpop.f32.mrf.mxu0
        %v402 = vadd.f32 %v321, %v401
        %v403 = vpop.f32.mrf.mxu0
        %404 = vdwg.mxu0
        %v405 = vmax.f32 %v397, 0.0
        %v406 = vmax.f32 %v402, 0.0
        %v407 = vld [vmem:[#allocation2] sm:$0xff]
        %v408 = vld [vmem:[#allocation2 + $0x8] sm:$0xff]
        %v409 = vld [vmem:[#allocation2 + $0x10] sm:$0xff]
        %v410 = vld [vmem:[#allocation2 + $0x18] sm:$0xff]
        %v411 = vld [vmem:[#allocation2 + $0x20] sm:$0xff]
        %v412 = vld [vmem:[#allocation2 + $0x28] sm:$0xff]
        %v413 = vld [vmem:[#allocation2 + $0x30] sm:$0xff]
        %v414 = vld [vmem:[#allocation2 + $0x38] sm:$0xff]
        %v415 = vld [vmem:[#allocation2 + $0x40] sm:$0xff]
        %v416 = vld [vmem:[#allocation2 + $0x48] sm:$0xff]
        %v417 = vld [vmem:[#allocation2 + $0x50] sm:$0xff]
        %v418 = vld [vmem:[#allocation2 + $0x58] sm:$0xff]
        %v419 = vld [vmem:[#allocation2 + $0x60] sm:$0xff]
        %v420 = vld [vmem:[#allocation2 + $0x68] sm:$0xff]
        %v421 = vld [vmem:[#allocation2 + $0x70] sm:$0xff]
        %v422 = vld [vmem:[#allocation2 + $0x78] sm:$0xff]
        %v423 = vld [vmem:[%s4] sm:$0x1]
        %v425 = vlaneseq
        %v426 = vshrl.u32 %v425, 7
        %v427 = vsub.s32 0, %v426
        %v428 = vrot.slane %v423, %v427
        %430 = vmatprep.subr.mxu0 0.0
        %431 = vmatpush1.msra.mxu0 %v422
        %432 = vmatprep.subr.mxu0 0.0
        %433 = vmatpush1.msra.mxu0 %v421
        %434 = vmatprep.subr.mxu0 0.0
        %435 = vmatpush1.msra.mxu0 %v420
        %436 = vmatprep.subr.mxu0 0.0
        %437 = vmatpush1.msra.mxu0 %v419
        %438 = vmatprep.subr.mxu0 0.0
        %439 = vmatpush1.msra.mxu0 %v418
        %440 = vmatprep.subr.mxu0 0.0
        %441 = vmatpush1.msra.mxu0 %v417
        %442 = vmatprep.subr.mxu0 0.0
        %443 = vmatpush1.msra.mxu0 %v416
        %444 = vmatprep.subr.mxu0 0.0
        %445 = vmatpush1.msra.mxu0 %v415
        %446 = vmatprep.subr.mxu0 0.0
        %447 = vmatpush1.msra.mxu0 %v414
        %448 = vmatprep.subr.mxu0 0.0
        %449 = vmatpush1.msra.mxu0 %v413
        %450 = vmatprep.subr.mxu0 0.0
        %451 = vmatpush1.msra.mxu0 %v412
        %452 = vmatprep.subr.mxu0 0.0
        %453 = vmatpush1.msra.mxu0 %v411
        %454 = vmatprep.subr.mxu0 0.0
        %455 = vmatpush1.msra.mxu0 %v410
        %456 = vmatprep.subr.mxu0 0.0
        %457 = vmatpush1.msra.mxu0 %v409
        %458 = vmatprep.subr.mxu0 0.0
        %459 = vmatpush1.msra.mxu0 %v408
        %460 = vmatprep.subr.mxu0 0.0
        %461 = vmatpush1.msra.mxu0 %v407
        %462 = vmatprep.subr.mxu0 0.0
        %463 = vmatpush2.msra.mxu0 0.0
        %464 = vmatprep.subr.mxu0 0.0
        %465 = vmatpush2.msra.mxu0 0.0
        %466 = vmatprep.subr.mxu0 0.0
        %467 = vmatpush2.msra.mxu0 0.0
        %468 = vmatprep.subr.mxu0 0.0
        %469 = vmatpush2.msra.mxu0 0.0
        %470 = vmatprep.subr.mxu0 0.0
        %471 = vmatpush2.msra.mxu0 0.0
        %472 = vmatprep.subr.mxu0 0.0
        %473 = vmatpush2.msra.mxu0 0.0
        %474 = vmatprep.subr.mxu0 0.0
        %475 = vmatpush2.msra.mxu0 0.0
        %476 = vmatprep.subr.mxu0 0.0
        %477 = vmatpush2.msra.mxu0 0.0
        %478 = vmatprep.subr.mxu0 0.0
        %479 = vmatpush2.msra.mxu0 0.0
        %480 = vmatprep.subr.mxu0 0.0
        %481 = vmatpush2.msra.mxu0 0.0
        %482 = vmatprep.subr.mxu0 0.0
        %483 = vmatpush2.msra.mxu0 0.0
        %484 = vmatprep.subr.mxu0 0.0
        %485 = vmatpush2.msra.mxu0 0.0
        %486 = vmatprep.subr.mxu0 0.0
        %487 = vmatpush2.msra.mxu0 0.0
        %488 = vmatprep.subr.mxu0 0.0
        %489 = vmatpush2.msra.mxu0 0.0
        %490 = vmatprep.subr.mxu0 0.0
        %491 = vmatpush2.msra.mxu0 0.0
        %492 = vmatprep.subr.mxu0 0.0
        %493 = vmatpush2.msra.mxu0 0.0
        %494 = vmatprep.mubr.f32.mxu0 0.0
        %495 = vmatmul.mubr.f32.gmra.mxu0 %v405
        %v496 = vpop.f32.mrf.mxu0
        %v497 = vadd.f32 %v428, %v496
        %v498 = vpop.f32.mrf.mxu0
        %499 = vmatprep.mubr.f32.mxu0 0.0
        %500 = vmatmul.mubr.f32.gmra.mxu0 %v406
        %v501 = vpop.f32.mrf.mxu0
        %v502 = vadd.f32 %v428, %v501
        %v503 = vpop.f32.mrf.mxu0
        %504 = vdwg.mxu0
        %v505 = vmax.f32 %v497, 0.0
        %v506 = vmax.f32 %v502, 0.0
        %v507 = vld [vmem:[#allocation4] sm:$0xff]
        %v508 = vld [vmem:[#allocation4 + $0x8] sm:$0xff]
        %v509 = vld [vmem:[#allocation4 + $0x10] sm:$0xff]
        %v510 = vld [vmem:[#allocation4 + $0x18] sm:$0xff]
        %v511 = vld [vmem:[#allocation4 + $0x20] sm:$0xff]
        %v512 = vld [vmem:[#allocation4 + $0x28] sm:$0xff]
        %v513 = vld [vmem:[#allocation4 + $0x30] sm:$0xff]
        %v514 = vld [vmem:[#allocation4 + $0x38] sm:$0xff]
        %v515 = vld [vmem:[#allocation4 + $0x40] sm:$0xff]
        %v516 = vld [vmem:[#allocation4 + $0x48] sm:$0xff]
        %v517 = vld [vmem:[#allocation4 + $0x50] sm:$0xff]
        %v518 = vld [vmem:[#allocation4 + $0x58] sm:$0xff]
        %v519 = vld [vmem:[#allocation4 + $0x60] sm:$0xff]
        %v520 = vld [vmem:[#allocation4 + $0x68] sm:$0xff]
        %v521 = vld [vmem:[#allocation4 + $0x70] sm:$0xff]
        %v522 = vld [vmem:[#allocation4 + $0x78] sm:$0xff]
        %v523 = vld [vmem:[%s6] sm:$0x1]
        %v525 = vlaneseq
        %v526 = vshrl.u32 %v525, 7
        %v527 = vsub.s32 0, %v526
        %v528 = vrot.slane %v523, %v527
        %530 = vmatprep.subr.mxu0 0.0
        %531 = vmatpush1.msra.mxu0 %v522
        %532 = vmatprep.subr.mxu0 0.0
        %533 = vmatpush1.msra.mxu0 %v521
        %534 = vmatprep.subr.mxu0 0.0
        %535 = vmatpush1.msra.mxu0 %v520
        %536 = vmatprep.subr.mxu0 0.0
        %537 = vmatpush1.msra.mxu0 %v519
        %538 = vmatprep.subr.mxu0 0.0
        %539 = vmatpush1.msra.mxu0 %v518
        %540 = vmatprep.subr.mxu0 0.0
        %541 = vmatpush1.msra.mxu0 %v517
        %542 = vmatprep.subr.mxu0 0.0
        %543 = vmatpush1.msra.mxu0 %v516
        %544 = vmatprep.subr.mxu0 0.0
        %545 = vmatpush1.msra.mxu0 %v515
        %546 = vmatprep.subr.mxu0 0.0
        %547 = vmatpush1.msra.mxu0 %v514
        %548 = vmatprep.subr.mxu0 0.0
        %549 = vmatpush1.msra.mxu0 %v513
        %550 = vmatprep.subr.mxu0 0.0
        %551 = vmatpush1.msra.mxu0 %v512
        %552 = vmatprep.subr.mxu0 0.0
        %553 = vmatpush1.msra.mxu0 %v511
        %554 = vmatprep.subr.mxu0 0.0
        %555 = vmatpush1.msra.mxu0 %v510
        %556 = vmatprep.subr.mxu0 0.0
        %557 = vmatpush1.msra.mxu0 %v509
        %558 = vmatprep.subr.mxu0 0.0
        %559 = vmatpush1.msra.mxu0 %v508
        %560 = vmatprep.subr.mxu0 0.0
        %561 = vmatpush1.msra.mxu0 %v507
        %562 = vmatprep.subr.mxu0 0.0
        %563 = vmatpush2.msra.mxu0 0.0
        %564 = vmatprep.subr.mxu0 0.0
        %565 = vmatpush2.msra.mxu0 0.0
        %566 = vmatprep.subr.mxu0 0.0
        %567 = vmatpush2.msra.mxu0 0.0
        %568 = vmatprep.subr.mxu0 0.0
        %569 = vmatpush2.msra.mxu0 0.0
        %570 = vmatprep.subr.mxu0 0.0
        %571 = vmatpush2.msra.mxu0 0.0
        %572 = vmatprep.subr.mxu0 0.0
        %573 = vmatpush2.msra.mxu0 0.0
        %574 = vmatprep.subr.mxu0 0.0
        %575 = vmatpush2.msra.mxu0 0.0
        %576 = vmatprep.subr.mxu0 0.0
        %577 = vmatpush2.msra.mxu0 0.0
        %578 = vmatprep.subr.mxu0 0.0
        %579 = vmatpush2.msra.mxu0 0.0
        %580 = vmatprep.subr.mxu0 0.0
        %581 = vmatpush2.msra.mxu0 0.0
        %582 = vmatprep.subr.mxu0 0.0
        %583 = vmatpush2.msra.mxu0 0.0
        %584 = vmatprep.subr.mxu0 0.0
        %585 = vmatpush2.msra.mxu0 0.0
        %586 = vmatprep.subr.mxu0 0.0
        %587 = vmatpush2.msra.mxu0 0.0
        %588 = vmatprep.subr.mxu0 0.0
        %589 = vmatpush2.msra.mxu0 0.0
        %590 = vmatprep.subr.mxu0 0.0
        %591 = vmatpush2.msra.mxu0 0.0
        %592 = vmatprep.subr.mxu0 0.0
        %593 = vmatpush2.msra.mxu0 0.0
        %594 = vmatprep.mubr.f32.mxu0 0.0
        %595 = vmatmul.mubr.f32.gmra.mxu0 %v505
        %v596 = vpop.f32.mrf.mxu0
        %v597 = vadd.f32 %v528, %v596
        %v598 = vpop.f32.mrf.mxu0
        %599 = vmatprep.mubr.f32.mxu0 0.0
        %600 = vmatmul.mubr.f32.gmra.mxu0 %v506
        %v601 = vpop.f32.mrf.mxu0
        %v602 = vadd.f32 %v528, %v601
        %v603 = vpop.f32.mrf.mxu0
        %604 = vdwg.mxu0
        %v605 = vmul.f32 %v597, %v597
        %v606 = vmul.f32 %v602, %v602
        %609 = vrot.lane.b32.xlu0 %v605, 64
        %v610 = vpop.permute.xlu0 %609
        %611 = vrot.lane.b32.xlu0 %v606, 64
        %v612 = vpop.permute.xlu0 %611
        %v615 = vadd.f32 %v605, %v610
        %v616 = vadd.f32 %v606, %v612
        %vm617 = vcmask 15360
        %618 = vst.msk [vmem:[%s310] sm:$0xff] %vm617, %v615
        %619 = vst.msk [vmem:[%s310 + $0x8] sm:$0xff] %vm617, %v616
        %s620 = smul.u32 2, %s20
        %p621 = scmp.lt.s32.totalorder %s620, 3
        %s622 = scalar_select %p621, %s620, 3
        %s623 = smul.addr %s622, 8
        %s624 = scalar_lea.vmem %s7, %s623
        // Predicated region
        $region57: #{tpu_custom_call.1} parent=47 // pred_check
          %p625 = pneg %p190
        $region58: #{tpu_custom_call.1} parent=47 // pred_check_branch
          %627 = sbr.rel (%p625) target = $region60
        $region59: #{tpu_custom_call.1} parent=47 // pred_region
          %s628 = smul.u32 2, %s20
        $region60: #{tpu_custom_call.1} parent=47 // pred_fallthru
          _
      $region48: #{tpu_custom_call.1} parent=5 // pred_fallthru
        _
      %p629 = scmp.le.s32.totalorder 2, %s15
      // Predicated region
      $region61: #{tpu_custom_call.1} parent=5 // pred_check
        %p630 = pneg %p629
      $region62: #{tpu_custom_call.1} parent=5 // pred_check_branch
        %632 = sbr.rel (%p630) target = $region64
      $region63: #{tpu_custom_call.1} parent=5 // pred_region
        %s633 = ssub.s32 %s15, 2
        // Predicated region
        $region65: #{tpu_custom_call.1} parent=63 // pred_check
          %p634 = pneg %p196
        $region66: #{tpu_custom_call.1} parent=63 // pred_check_branch
          %636 = sbr.rel (%p634) target = $region68
        $region67: #{tpu_custom_call.1} parent=63 // pred_region
          %s637 = smul.u32 2, %s21
          %p638 = scmp.lt.s32.totalorder %s637, 3
          %s639 = scalar_select %p638, %s637, 3
          %s640 = smul.addr %s639, 8
          %s641 = scalar_lea.vmem %s7, %s640
        $region68: #{tpu_custom_call.1} parent=63 // pred_fallthru
          _
      $region64: #{tpu_custom_call.1} parent=5 // pred_fallthru
        _
    $region6: #{tpu_custom_call.1} parent=1 // loop_footer
      %s19 = sadd.s32 1, %s15
    $region7: #{tpu_custom_call.1} parent=1 // loop_footer_branch
      %14 = sbr.rel target = $region3
    $region8: #{tpu_custom_call.1} parent=1 // loop_exit
      _
    %642 = vsyncpa [#allocation3], 1
    %s643 = scalar_lea.sflag [#allocation3], 1
    %644 = vsyncpa %s643, 1
    %645 = vsyncpa [#allocation5], 1

</llo_original>
